<compile_context>
chip_gen: v6e
topology: v6e:2x2x1
jax: 0.10.0
libtpu: 0.0.40
codegen_flags: <defaults>
</compile_context>

<pallas_src>
import jax
import jax.numpy as jnp
from jax.experimental import pallas as pl
from jax.experimental.pallas import tpu as pltpu

SCALES = (1, 3, 5, 7)
MAXPAD = max(s // 2 for s in SCALES)   # = 3
NTAPS = 2 * MAXPAD + 1                 # = 7


def _ms_fused_kernel(x_ref, w_ref, b_ref, o_ref):
    # x_ref: (1, C, Lp)        zero-padded NCW slice for one batch element
    # w_ref: (C, NTAPS * C)    pre-fused weight (4 branches + 1x1 fusion folded)
    # b_ref: (C, 1)            pre-fused bias
    # o_ref: (1, C, L)
    C = o_ref.shape[1]
    L = o_ref.shape[2]
    x = x_ref[0]                                                  # (C, Lp)
    # 7-tap im2col slab: row-block j holds x[:, l + (j - MAXPAD)] (zero padded).
    slab = jnp.concatenate([x[:, j:j + L] for j in range(NTAPS)], axis=0)  # (7C, L)
    out = jnp.dot(w_ref[...], slab, preferred_element_type=jnp.float32)    # (C, L)
    out = out + b_ref[...]                       # (C, 1) broadcast over lanes
    o_ref[0] = out.astype(o_ref.dtype)


def _fuse_params(params, C):
    """Fold the 4 conv branches + the 1x1 fusion into one 7-tap weight/bias (f32)."""
    Co = C // len(SCALES)
    # Wbig[j, ci, f]: tap j (sequence offset d = j - MAXPAD) weight from input
    # channel ci to concatenated-branch channel f (zero where a scale has no tap).
    Wbig = jnp.zeros((NTAPS, C, C), jnp.float32)
    for si, s in enumerate(SCALES):
        pad = s // 2
        w_kic = jnp.transpose(params[f"w{s}"].astype(jnp.float32), (2, 1, 0))  # (s, C, Co)
        Wbig = Wbig.at[MAXPAD - pad: MAXPAD - pad + s, :,
                       si * Co:(si + 1) * Co].set(w_kic)
    b_big = jnp.concatenate([params[f"b{s}"] for s in SCALES]).astype(jnp.float32)  # (C,)
    wf = params["wf"][:, :, 0].astype(jnp.float32)                                  # (C, C)
    # Wtot[o, j*C + ci] = sum_f wf[o, f] * Wbig[j, ci, f]
    w_tot = jnp.einsum("of,jif->oji", wf, Wbig).reshape(C, NTAPS * C)
    b_tot = wf @ b_big + params["bf"].astype(jnp.float32)
    return w_tot, b_tot.reshape(C, 1)


def multi_scale_feature_extractor(x_ncw, params):
    """x_ncw: [B, C, L] float32. Returns [B, C, L] (matches PyTorch)."""
    B, C, L = x_ncw.shape
    assert C % len(SCALES) == 0
    w_tot, b_tot = _fuse_params(params, C)

    # Zero-pad only the sequence (lane) axis -- no transposes anywhere.
    x_pad = jnp.pad(x_ncw, ((0, 0), (0, 0), (MAXPAD, MAXPAD)))
    Lp = L + 2 * MAXPAD

    grid_spec = pltpu.PrefetchScalarGridSpec(
        num_scalar_prefetch=0,
        grid=(B,),
        in_specs=[
            pl.BlockSpec((1, C, Lp), lambda b: (b, 0, 0)),
            # Constant-index weight/bias blocks: the pipeline only re-DMAs a
            # block when its index changes, so these are fetched once.
            pl.BlockSpec((C, NTAPS * C), lambda b: (0, 0)),
            pl.BlockSpec((C, 1), lambda b: (0, 0)),
        ],
        out_specs=pl.BlockSpec((1, C, L), lambda b: (b, 0, 0)),
    )

    return pl.pallas_call(
        _ms_fused_kernel,
        out_shape=jax.ShapeDtypeStruct((B, C, L), jnp.float32),
        grid_spec=grid_spec,
        compiler_params=pltpu.CompilerParams(
            dimension_semantics=("parallel",)),
    )(x_pad, w_tot, b_tot)


def _reference(x_ncw, params):
    """Pure-JAX reference using lax conv (NCW), mirrors the PyTorch forward."""
    feats = []
    for s in SCALES:
        pad = s // 2
        y = jax.lax.conv_general_dilated(
            x_ncw, params[f"w{s}"], window_strides=(1,),
            padding=[(pad, pad)],
            dimension_numbers=("NCH", "OIH", "NCH"))
        y = y + params[f"b{s}"][None, :, None]
        feats.append(y)
    fused = jnp.concatenate(feats, axis=1)
    out = jax.lax.conv_general_dilated(
        fused, params["wf"], window_strides=(1,), padding=[(0, 0)],
        dimension_numbers=("NCH", "OIH", "NCH"))
    return out + params["bf"][None, :, None]


def _init_params(key, C):
    Co = C // len(SCALES)
    params = {}
    keys = jax.random.split(key, 2 * len(SCALES) + 2)
    for i, s in enumerate(SCALES):
        params[f"w{s}"] = 0.1 * jax.random.normal(
            keys[2 * i], (Co, C, s), jnp.float32)
        params[f"b{s}"] = 0.1 * jax.random.normal(
            keys[2 * i + 1], (Co,), jnp.float32)
    params["wf"] = 0.1 * jax.random.normal(keys[-2], (C, C, 1), jnp.float32)
    params["bf"] = 0.1 * jax.random.normal(keys[-1], (C,), jnp.float32)
    return params


if __name__ == "__main__":
    B, C, L = 2, 16, 16   # input_dim=16, scales=[1,3,5,7] -> 4 channels/branch
    key = jax.random.PRNGKey(0)
    kx, kp = jax.random.split(key)
    x = jax.random.normal(kx, (B, C, L), jnp.float32)
    params = _init_params(kp, C)

    out = jax.block_until_ready(multi_scale_feature_extractor(x, params))
    ref = jax.block_until_ready(_reference(x, params))

    assert out.shape == (B, C, L), out.shape
    err = float(jnp.max(jnp.abs(out - ref)))
    assert err < 1e-4, err
    print("KERNEL_OK")
</pallas_src>

<mosaic_0001>
module attributes {stable_mosaic.version = 11 : i64} {
  func.func @_ms_fused_kernel(%arg0: i32, %arg1: memref<1x16x22xf32, #tpu.memory_space<vmem>>, %arg2: memref<16x112xf32, #tpu.memory_space<vmem>>, %arg3: memref<16x1xf32, #tpu.memory_space<vmem>>, %arg4: memref<1x16x16xf32, #tpu.memory_space<vmem>>) attributes {dimension_semantics = [#tpu.dimension_semantics<parallel>], iteration_bounds = array<i64: 2>, scalar_prefetch = 0 : i64, scratch_operands = 0 : i64, tpu.core_type = #tpu.core_type<tc>, window_params = [{transform_indices = @transform_0, window_bounds = array<i64: 1, 16, 22>}, {pipeline_mode = #tpu.pipeline_mode<synchronous>, transform_indices = @transform_1, window_bounds = array<i64: 16, 112>}, {pipeline_mode = #tpu.pipeline_mode<synchronous>, transform_indices = @transform_2, window_bounds = array<i64: 16, 1>}, {transform_indices = @transform_3, window_bounds = array<i64: 1, 16, 16>}]} {
    %c0 = arith.constant 0 : index
    %c0_0 = arith.constant 0 : index
    %c0_1 = arith.constant 0 : index
    %0 = vector.load %arg1[%c0, %c0_0, %c0_1] : memref<1x16x22xf32, #tpu.memory_space<vmem>>, vector<1x16x22xf32>
    %1 = vector.shape_cast %0 : vector<1x16x22xf32> to vector<16x22xf32>
    %2 = vector.extract_strided_slice %1 {offsets = [0, 0], sizes = [16, 16], strides = [1, 1]} : vector<16x22xf32> to vector<16x16xf32>
    %3 = vector.extract_strided_slice %1 {offsets = [0, 1], sizes = [16, 16], strides = [1, 1]} : vector<16x22xf32> to vector<16x16xf32>
    %4 = vector.extract_strided_slice %1 {offsets = [0, 2], sizes = [16, 16], strides = [1, 1]} : vector<16x22xf32> to vector<16x16xf32>
    %5 = vector.extract_strided_slice %1 {offsets = [0, 3], sizes = [16, 16], strides = [1, 1]} : vector<16x22xf32> to vector<16x16xf32>
    %6 = vector.extract_strided_slice %1 {offsets = [0, 4], sizes = [16, 16], strides = [1, 1]} : vector<16x22xf32> to vector<16x16xf32>
    %7 = vector.extract_strided_slice %1 {offsets = [0, 5], sizes = [16, 16], strides = [1, 1]} : vector<16x22xf32> to vector<16x16xf32>
    %8 = vector.extract_strided_slice %1 {offsets = [0, 6], sizes = [16, 16], strides = [1, 1]} : vector<16x22xf32> to vector<16x16xf32>
    %9 = tpu.concatenate %2, %3, %4, %5, %6, %7, %8 in 0 : vector<16x16xf32>, vector<16x16xf32>, vector<16x16xf32>, vector<16x16xf32>, vector<16x16xf32>, vector<16x16xf32>, vector<16x16xf32> -> vector<112x16xf32>
    %c0_2 = arith.constant 0 : index
    %c0_3 = arith.constant 0 : index
    %10 = vector.load %arg2[%c0_2, %c0_3] : memref<16x112xf32, #tpu.memory_space<vmem>>, vector<16x112xf32>
    %cst = arith.constant dense<0.000000e+00> : vector<16x16xf32>
    %11 = tpu.matmul %10, %9, %cst {dimension_numbers = #tpu.dot_dimension_numbers<[1], [0], [0], [1], [0, 0, 1, 1], [], []>} : vector<16x112xf32>, vector<112x16xf32>, vector<16x16xf32> -> vector<16x16xf32>
    %c0_4 = arith.constant 0 : index
    %c0_5 = arith.constant 0 : index
    %12 = vector.load %arg3[%c0_4, %c0_5] : memref<16x1xf32, #tpu.memory_space<vmem>>, vector<16x1xf32>
    %13 = vector.broadcast %12 : vector<16x1xf32> to vector<16x16xf32>
    %14 = arith.addf %11, %13 : vector<16x16xf32>
    %c0_6 = arith.constant 0 : index
    %c0_7 = arith.constant 0 : index
    %c0_8 = arith.constant 0 : index
    %15 = vector.load %arg4[%c0_6, %c0_7, %c0_8] : memref<1x16x16xf32, #tpu.memory_space<vmem>>, vector<1x16x16xf32>
    %16 = vector.shape_cast %15 : vector<1x16x16xf32> to vector<16x16xf32>
    %17 = vector.shape_cast %14 : vector<16x16xf32> to vector<1x16x16xf32>
    tpu.vector_store %arg4[%c0_6, %c0_7, %c0_8], %17 {strides = array<i32>} : memref<1x16x16xf32, #tpu.memory_space<vmem>>, vector<1x16x16xf32>,
    return
  }
  func.func @transform_0(%arg0: i32) -> (i32, i32, i32) {
    %c0_i32 = arith.constant 0 : i32
    %c0_i32_0 = arith.constant 0 : i32
    %c0_i32_1 = arith.constant 0 : i32
    return %arg0, %c0_i32, %c0_i32_0 : i32, i32, i32
  }
  func.func @transform_1(%arg0: i32) -> (i32, i32) {
    %c0_i32 = arith.constant 0 : i32
    %c0_i32_0 = arith.constant 0 : i32
    %c0_i32_1 = arith.constant 0 : i32
    return %c0_i32, %c0_i32_0 : i32, i32
  }
  func.func @transform_2(%arg0: i32) -> (i32, i32) {
    %c0_i32 = arith.constant 0 : i32
    %c0_i32_0 = arith.constant 0 : i32
    %c0_i32_1 = arith.constant 0 : i32
    return %c0_i32, %c0_i32_0 : i32, i32
  }
  func.func @transform_3(%arg0: i32) -> (i32, i32, i32) {
    %c0_i32 = arith.constant 0 : i32
    %c0_i32_0 = arith.constant 0 : i32
    %c0_i32_1 = arith.constant 0 : i32
    return %arg0, %c0_i32, %c0_i32_0 : i32, i32, i32
  }
}

</mosaic_0001>

<llo_original>
// kernel: tpu_custom_call.1
$region0: #{tpu_custom_call.1}
  #allocation0 [shape = 'u32[]', space=smem, size = 0x4, offset = 0x4, fixed_abs, tag = 'smem constant byte address 0x4 - core index']
  #allocation1 [shape = 'u32[144,128]{1,0:T(1,128)}', space=vmem, size = 0x12000, scoped, tag = 'internal scratch']
  %s0 = inlined_call_operand.hbm [shape: f32[2,16,22], index: 0, kind: input, shape index: {}]
  %s1 = inlined_call_operand.vmem [shape: f32[16,112], index: 1, kind: input, shape index: {}]
  %s2 = inlined_call_operand.vmem [shape: f32[16,1], index: 2, kind: input, shape index: {}]
  %s3 = inlined_call_operand.hbm [shape: f32[2,16,16], index: 3, kind: output, shape index: {}]
  %s4 = sld [smem:[#allocation0]]
  $region49: #{tpu_custom_call.1} parent=0
    _
  %s6 = ssub.s32 1, %s4
  %s7 = scalar_select 0, %s6, %s4
  $region1: #{tpu_custom_call.1} parent=0
    #allocation2 [shape = 'u8[16384]{0}', space=vmem, size = 0x4000, scoped, tag = 'input window, operand 0']
    #allocation3 [shape = 's32[2]{0}', space=sflag, size = 0x8, scoped, tag = 'scoped memory for tpu_custom_call.1']
    #allocation4 [shape = 's32[2]{0}', space=sflag, size = 0x8, scoped, tag = 'scoped memory for tpu_custom_call.1']
    #allocation5 [shape = 'u8[16384]{0}', space=vmem, size = 0x4000, scoped, tag = 'output window, operand 0']
    %8 = vsyncpa [#allocation3], 0
    %s9 = scalar_lea.sflag [#allocation3], 1
    %10 = vsyncpa %s9, 0
    %11 = vsyncpa [#allocation4], 0
    %s12 = scalar_lea.sflag [#allocation4], 1
    %13 = vsyncpa %s12, 0
    loop: start=0, step=1, limit=4
    $region2: #{tpu_custom_call.1} parent=1 // loop_pre_header
      _
    $region3: #{tpu_custom_call.1} parent=1 // loop_header
      %s15 = sphi 0, %s19
      %p16 = scmp.ge.s32.totalorder %s15, 4
      %s25 = sphi 0, %s27
      %s28 = sphi 0, %s25
      %s29 = sphi 0, %s28
      %s45 = sphi 0, %s29
      %s49 = sphi 0, %s49
      %s51 = sphi 0, %s49
      %s52 = sphi 0, %s51
      %s66 = sphi 0, %s52
      %s70 = sphi 0, %s70
      %s72 = sphi 0, %s70
      %s73 = sphi 0, %s72
      %s87 = sphi 0, %s73
      %s93 = sphi 0, %s95
      %s96 = sphi 0, %s93
      %s97 = sphi 0, %s96
      %s113 = sphi 0, %s97
    $region4: #{tpu_custom_call.1} parent=1 // loop_header_branch
      %18 = sbr.rel (%p16) target = $region8
    $region5: #{tpu_custom_call.1} parent=1 // loop_body
      %s20 = ssub.s32 %s15, 1
      %s21 = ssub.s32 %s15, 2
      %s22 = sadd.s32 %s15, 1
      %s23 = ssub.s32 %s15, %s22
      %p24 = scmp.eq.s32.totalorder %s23, 0
      %s26 = sadd.s32 %s25, 1
      %s27 = scalar_select %p24, %s25, %s26
      %p30 = pneg %p24
      %p31 = scmp.eq.s32.totalorder %s15, 1
      %p32 = por %p30, %p31
      %p33 = scmp.ne.s32.totalorder %s25, %s28
      %p34 = scmp.eq.s32.totalorder %s15, 0
      %p35 = por %p33, %p34
      %p36 = scmp.ne.s32.totalorder %s25, %s28
      %p37 = scmp.eq.s32.totalorder %s20, 1
      %p38 = por %p36, %p37
      %p39 = scmp.ne.s32.totalorder %s28, %s29
      %p40 = scmp.eq.s32.totalorder %s20, 0
      %p41 = por %p39, %p40
      %p42 = scmp.ne.s32.totalorder %s28, %s29
      %p43 = scmp.eq.s32.totalorder %s21, 1
      %p44 = por %p42, %p43
      %p46 = scmp.ne.s32.totalorder %s29, %s45
      %p47 = scmp.eq.s32.totalorder %s21, 0
      %p48 = por %p46, %p47
      %s50 = sadd.s32 %s49, 1
      %p53 = scmp.eq.s32.totalorder %s15, 1
      %p54 = scmp.ne.s32.totalorder %s49, %s51
      %p55 = scmp.eq.s32.totalorder %s15, 0
      %p56 = por %p54, %p55
      %p57 = scmp.ne.s32.totalorder %s49, %s51
      %p58 = scmp.eq.s32.totalorder %s20, 1
      %p59 = por %p57, %p58
      %p60 = scmp.ne.s32.totalorder %s51, %s52
      %p61 = scmp.eq.s32.totalorder %s20, 0
      %p62 = por %p60, %p61
      %p63 = scmp.ne.s32.totalorder %s51, %s52
      %p64 = scmp.eq.s32.totalorder %s21, 1
      %p65 = por %p63, %p64
      %p67 = scmp.ne.s32.totalorder %s52, %s66
      %p68 = scmp.eq.s32.totalorder %s21, 0
      %p69 = por %p67, %p68
      %s71 = sadd.s32 %s70, 1
      %p74 = scmp.eq.s32.totalorder %s15, 1
      %p75 = scmp.ne.s32.totalorder %s70, %s72
      %p76 = scmp.eq.s32.totalorder %s15, 0
      %p77 = por %p75, %p76
      %p78 = scmp.ne.s32.totalorder %s70, %s72
      %p79 = scmp.eq.s32.totalorder %s20, 1
      %p80 = por %p78, %p79
      %p81 = scmp.ne.s32.totalorder %s72, %s73
      %p82 = scmp.eq.s32.totalorder %s20, 0
      %p83 = por %p81, %p82
      %p84 = scmp.ne.s32.totalorder %s72, %s73
      %p85 = scmp.eq.s32.totalorder %s21, 1
      %p86 = por %p84, %p85
      %p88 = scmp.ne.s32.totalorder %s73, %s87
      %p89 = scmp.eq.s32.totalorder %s21, 0
      %p90 = por %p88, %p89
      %s91 = ssub.s32 %s15, %s22
      %p92 = scmp.eq.s32.totalorder %s91, 0
      %s94 = sadd.s32 %s93, 1
      %s95 = scalar_select %p92, %s93, %s94
      %p98 = pneg %p92
      %p99 = scmp.eq.s32.totalorder %s15, 1
      %p100 = por %p98, %p99
      %p101 = scmp.ne.s32.totalorder %s93, %s96
      %p102 = scmp.eq.s32.totalorder %s15, 0
      %p103 = por %p101, %p102
      %p104 = scmp.ne.s32.totalorder %s93, %s96
      %p105 = scmp.eq.s32.totalorder %s20, 1
      %p106 = por %p104, %p105
      %p107 = scmp.ne.s32.totalorder %s96, %s97
      %p108 = scmp.eq.s32.totalorder %s20, 0
      %p109 = por %p107, %p108
      %p110 = scmp.ne.s32.totalorder %s96, %s97
      %p111 = scmp.eq.s32.totalorder %s21, 1
      %p112 = por %p110, %p111
      %p114 = scmp.ne.s32.totalorder %s97, %s113
      %p115 = scmp.eq.s32.totalorder %s21, 0
      %p116 = por %p114, %p115
      %p117 = scmp.le.s32.totalorder 1, %s15
      %p118 = scmp.lt.s32.totalorder %s15, 3
      %p119 = pnand %p117, %p118
      %p120 = pneg %p119
      // Predicated region
      $region9: #{tpu_custom_call.1} parent=5 // pred_check
        _
      $region10: #{tpu_custom_call.1} parent=5 // pred_check_branch
        %122 = sbr.rel (%p119) target = $region12
      $region11: #{tpu_custom_call.1} parent=5 // pred_region
        %s123 = ssub.s32 %s15, 1
        // Predicated region
        $region13: #{tpu_custom_call.1} parent=11 // pred_check
          %p124 = pneg %p62
        $region14: #{tpu_custom_call.1} parent=11 // pred_check_branch
          %126 = sbr.rel (%p124) target = $region16
        $region15: #{tpu_custom_call.1} parent=11 // pred_region
          _
        $region16: #{tpu_custom_call.1} parent=11 // pred_fallthru
          _
        // Predicated region
        $region17: #{tpu_custom_call.1} parent=11 // pred_check
          %p127 = pneg %p83
        $region18: #{tpu_custom_call.1} parent=11 // pred_check_branch
          %129 = sbr.rel (%p127) target = $region20
        $region19: #{tpu_custom_call.1} parent=11 // pred_region
          _
        $region20: #{tpu_custom_call.1} parent=11 // pred_fallthru
          _
      $region12: #{tpu_custom_call.1} parent=5 // pred_fallthru
        _
      %p130 = scmp.lt.s32.totalorder %s15, 2
      // Predicated region
      $region21: #{tpu_custom_call.1} parent=5 // pred_check
        %p131 = pneg %p130
      $region22: #{tpu_custom_call.1} parent=5 // pred_check_branch
        %133 = sbr.rel (%p131) target = $region24
      $region23: #{tpu_custom_call.1} parent=5 // pred_region
        // Predicated region
        $region25: #{tpu_custom_call.1} parent=23 // pred_check
          %p134 = pneg %p35
        $region26: #{tpu_custom_call.1} parent=23 // pred_check_branch
          %136 = sbr.rel (%p134) target = $region28
        $region27: #{tpu_custom_call.1} parent=23 // pred_region
          %s137 = sand.u32 %s25, 1
          %s138 = scalar_lea.sflag [#allocation3], %s137
          %s139 = sand.u32 %s25, 1
          %s140 = smul.addr %s139, 16
          %s141 = scalar_lea.vmem [#allocation2], %s140
          %s143 = ssub.s32 256, 256
          %144 = vsyncadd %s138, %s143
          %s145 = smul.addr %s15, 2
          %s146 = smul.addr %s145, 128
          %s147 = scalar_lea.hbm %s0, %s146
          %s148 = sshll.u32 %s141, 4
          %s149 = int_to_ptr.vmem [resolvable:$true] %s148
          %154 = dma.hbm_to_vmem [thread:$0]  %s147, 256, %s149, %s138, 128, 128, 8
        $region28: #{tpu_custom_call.1} parent=23 // pred_fallthru
          _
      $region24: #{tpu_custom_call.1} parent=5 // pred_fallthru
        _
      %p155 = scmp.le.s32.totalorder 1, %s15
      %p156 = scmp.lt.s32.totalorder %s15, 3
      %p157 = pnand %p155, %p156
      %p158 = pneg %p157
      // Predicated region
      $region29: #{tpu_custom_call.1} parent=5 // pred_check
        _
      $region30: #{tpu_custom_call.1} parent=5 // pred_check_branch
        %160 = sbr.rel (%p157) target = $region32
      $region31: #{tpu_custom_call.1} parent=5 // pred_region
        %s161 = ssub.s32 %s15, 1
        %s162 = sand.u32 %s28, 1
        %s163 = scalar_lea.sflag [#allocation3], %s162
        %s164 = sand.u32 %s28, 1
        %s165 = smul.addr %s164, 16
        %s166 = scalar_lea.vmem [#allocation2], %s165
        // Predicated region
        $region33: #{tpu_custom_call.1} parent=31 // pred_check
          %p167 = pneg %p41
        $region34: #{tpu_custom_call.1} parent=31 // pred_check_branch
          %169 = sbr.rel (%p167) target = $region36
        $region35: #{tpu_custom_call.1} parent=31 // pred_region
          %170 = dma.done %s163, 256
        $region36: #{tpu_custom_call.1} parent=31 // pred_fallthru
          _
        %s171 = sand.u32 %s28, 1
        %s172 = scalar_lea.sflag [#allocation3], %s171
        %s173 = sand.u32 %s28, 1
        %s174 = smul.addr %s173, 16
        %s175 = scalar_lea.vmem [#allocation2], %s174
        %p176 = pneg %p41
        %p177 = pneg %p38
        %p178 = pneg %p62
        %p179 = pneg %p59
        %p180 = pneg %p83
        %p181 = pneg %p80
        %p182 = pneg %p109
        %p183 = pneg %p106
        %s184 = sand.u32 %s96, 1
        %s185 = scalar_lea.sflag [#allocation4], %s184
        %s186 = sand.u32 %s96, 1
        %s187 = smul.addr %s186, 16
        %s188 = scalar_lea.vmem [#allocation5], %s187
        %v189 = vld [vmem:[%s166] sm:$0xff]
        %v190 = vld [vmem:[%s166 + $0x8] sm:$0xff]
        %193 = vrot.lane.b32.xlu0 %v189, 127
        %v194 = vpop.permute.xlu0 %193
        %195 = vrot.lane.b32.xlu0 %v190, 127
        %v196 = vpop.permute.xlu0 %195
        %199 = vrot.lane.b32.xlu0 %v189, 126
        %v200 = vpop.permute.xlu0 %199
        %201 = vrot.lane.b32.xlu0 %v190, 126
        %v202 = vpop.permute.xlu0 %201
        %205 = vrot.lane.b32.xlu0 %v189, 125
        %v206 = vpop.permute.xlu0 %205
        %207 = vrot.lane.b32.xlu0 %v190, 125
        %v208 = vpop.permute.xlu0 %207
        %211 = vrot.lane.b32.xlu0 %v189, 124
        %v212 = vpop.permute.xlu0 %211
        %213 = vrot.lane.b32.xlu0 %v190, 124
        %v214 = vpop.permute.xlu0 %213
        %217 = vrot.lane.b32.xlu0 %v189, 123
        %v218 = vpop.permute.xlu0 %217
        %219 = vrot.lane.b32.xlu0 %v190, 123
        %v220 = vpop.permute.xlu0 %219
        %223 = vrot.lane.b32.xlu0 %v189, 122
        %v224 = vpop.permute.xlu0 %223
        %225 = vrot.lane.b32.xlu0 %v190, 122
        %v226 = vpop.permute.xlu0 %225
        %v229 = vld [vmem:[%s1] sm:$0xff]
        %v230 = vld [vmem:[%s1 + $0x8] sm:$0xff]
        %v231 = vld [vmem:[%s2] sm:$0xff]
        %v232 = vld [vmem:[%s2 + $0x8] sm:$0xff]
        %234 = vset.pattern.permute.xlu0 0
        %235 = vperm.xlu0 %234, %v231
        %v236 = vpop.permute.xlu0 %235
        %239 = vset.pattern.permute.xlu0 0
        %240 = vperm.xlu0 %239, %v232
        %v241 = vpop.permute.xlu0 %240
        %vm243 = vcmask 916480
        %v245 = vsel %vm243, %v229, 0
        %v248 = vsel %vm243, %v230, 0
        %250 = vmatprep.subr.mxu0 0.0
        %251 = vmatpush1.msra.mxu0 0.0
        %252 = vmatprep.subr.mxu0 0.0
        %253 = vmatpush1.msra.mxu0 0.0
        %254 = vmatprep.subr.mxu0 0.0
        %255 = vmatpush1.msra.mxu0 %v226
        %256 = vmatprep.subr.mxu0 0.0
        %257 = vmatpush1.msra.mxu0 %v224
        %258 = vmatprep.subr.mxu0 0.0
        %259 = vmatpush1.msra.mxu0 %v220
        %260 = vmatprep.subr.mxu0 0.0
        %261 = vmatpush1.msra.mxu0 %v218
        %262 = vmatprep.subr.mxu0 0.0
        %263 = vmatpush1.msra.mxu0 %v214
        %264 = vmatprep.subr.mxu0 0.0
        %265 = vmatpush1.msra.mxu0 %v212
        %266 = vmatprep.subr.mxu0 0.0
        %267 = vmatpush1.msra.mxu0 %v208
        %268 = vmatprep.subr.mxu0 0.0
        %269 = vmatpush1.msra.mxu0 %v206
        %270 = vmatprep.subr.mxu0 0.0
        %271 = vmatpush1.msra.mxu0 %v202
        %272 = vmatprep.subr.mxu0 0.0
        %273 = vmatpush1.msra.mxu0 %v200
        %274 = vmatprep.subr.mxu0 0.0
        %275 = vmatpush1.msra.mxu0 %v196
        %276 = vmatprep.subr.mxu0 0.0
        %277 = vmatpush1.msra.mxu0 %v194
        %278 = vmatprep.subr.mxu0 0.0
        %279 = vmatpush1.msra.mxu0 %v190
        %280 = vmatprep.subr.mxu0 0.0
        %281 = vmatpush1.msra.mxu0 %v189
        %282 = vmatprep.subr.mxu0 0.0
        %283 = vmatpush2.msra.mxu0 0.0
        %284 = vmatprep.subr.mxu0 0.0
        %285 = vmatpush2.msra.mxu0 0.0
        %286 = vmatprep.subr.mxu0 0.0
        %287 = vmatpush2.msra.mxu0 0.0
        %288 = vmatprep.subr.mxu0 0.0
        %289 = vmatpush2.msra.mxu0 0.0
        %290 = vmatprep.subr.mxu0 0.0
        %291 = vmatpush2.msra.mxu0 0.0
        %292 = vmatprep.subr.mxu0 0.0
        %293 = vmatpush2.msra.mxu0 0.0
        %294 = vmatprep.subr.mxu0 0.0
        %295 = vmatpush2.msra.mxu0 0.0
        %296 = vmatprep.subr.mxu0 0.0
        %297 = vmatpush2.msra.mxu0 0.0
        %298 = vmatprep.subr.mxu0 0.0
        %299 = vmatpush2.msra.mxu0 0.0
        %300 = vmatprep.subr.mxu0 0.0
        %301 = vmatpush2.msra.mxu0 0.0
        %302 = vmatprep.subr.mxu0 0.0
        %303 = vmatpush2.msra.mxu0 0.0
        %304 = vmatprep.subr.mxu0 0.0
        %305 = vmatpush2.msra.mxu0 0.0
        %306 = vmatprep.subr.mxu0 0.0
        %307 = vmatpush2.msra.mxu0 0.0
        %308 = vmatprep.subr.mxu0 0.0
        %309 = vmatpush2.msra.mxu0 0.0
        %310 = vmatprep.subr.mxu0 0.0
        %311 = vmatpush2.msra.mxu0 0.0
        %312 = vmatprep.subr.mxu0 0.0
        %313 = vmatpush2.msra.mxu0 0.0
        %314 = vmatprep.mubr.f32.mxu0 0.0
        %315 = vmatmul.mubr.f32.gmra.mxu0 %v245
        %v316 = vpop.f32.mrf.mxu0
        %v317 = vadd.f32 %v236, %v316
        %v318 = vpop.f32.mrf.mxu0
        %319 = vmatprep.mubr.f32.mxu0 0.0
        %320 = vmatmul.mubr.f32.gmra.mxu0 %v248
        %v321 = vpop.f32.mrf.mxu0
        %v322 = vadd.f32 %v241, %v321
        %v323 = vpop.f32.mrf.mxu0
        %324 = vdwg.mxu0
        %vm325 = vcmask 130048
        %326 = vst.msk [vmem:[%s188] sm:$0xff] %vm325, %v317
        %327 = vst.msk [vmem:[%s188 + $0x8] sm:$0xff] %vm325, %v322
        %s328 = sand.u32 %s96, 1
        %s329 = scalar_lea.sflag [#allocation4], %s328
        %s330 = sand.u32 %s96, 1
        %s331 = smul.addr %s330, 16
        %s332 = scalar_lea.vmem [#allocation5], %s331
        // Predicated region
        $region37: #{tpu_custom_call.1} parent=31 // pred_check
          %p333 = pneg %p106
        $region38: #{tpu_custom_call.1} parent=31 // pred_check_branch
          %335 = sbr.rel (%p333) target = $region40
        $region39: #{tpu_custom_call.1} parent=31 // pred_region
          %s337 = ssub.s32 256, 256
          %338 = vsyncadd %s329, %s337
          %s339 = smul.addr %s20, 2
          %s340 = smul.addr %s339, 128
          %s341 = scalar_lea.hbm %s3, %s340
          %s342 = sshll.u32 %s332, 4
          %s343 = int_to_ptr.vmem [resolvable:$true] %s342
          %348 = dma.vmem_to_hbm [thread:$0]  %s343, 256, %s341, %s329, 128, 128, 8
        $region40: #{tpu_custom_call.1} parent=31 // pred_fallthru
          _
      $region32: #{tpu_custom_call.1} parent=5 // pred_fallthru
        _
      %p349 = scmp.le.s32.totalorder 2, %s15
      // Predicated region
      $region41: #{tpu_custom_call.1} parent=5 // pred_check
        %p350 = pneg %p349
      $region42: #{tpu_custom_call.1} parent=5 // pred_check_branch
        %352 = sbr.rel (%p350) target = $region44
      $region43: #{tpu_custom_call.1} parent=5 // pred_region
        %s353 = ssub.s32 %s15, 2
        // Predicated region
        $region45: #{tpu_custom_call.1} parent=43 // pred_check
          %p354 = pneg %p112
        $region46: #{tpu_custom_call.1} parent=43 // pred_check_branch
          %356 = sbr.rel (%p354) target = $region48
        $region47: #{tpu_custom_call.1} parent=43 // pred_region
          %s357 = sand.u32 %s97, 1
          %s358 = scalar_lea.sflag [#allocation4], %s357
          %s359 = sand.u32 %s97, 1
          %s360 = smul.addr %s359, 16
          %s361 = scalar_lea.vmem [#allocation5], %s360
          %362 = dma.done %s358, 256
        $region48: #{tpu_custom_call.1} parent=43 // pred_fallthru
          _
      $region44: #{tpu_custom_call.1} parent=5 // pred_fallthru
        _
    $region6: #{tpu_custom_call.1} parent=1 // loop_footer
      %s19 = sadd.s32 1, %s15
    $region7: #{tpu_custom_call.1} parent=1 // loop_footer_branch
      %14 = sbr.rel target = $region3
    $region8: #{tpu_custom_call.1} parent=1 // loop_exit
      _
    %363 = vsyncpa [#allocation3], 1
    %s364 = scalar_lea.sflag [#allocation3], 1
    %365 = vsyncpa %s364, 1
    %366 = vsyncpa [#allocation4], 1
    %s367 = scalar_lea.sflag [#allocation4], 1
    %368 = vsyncpa %s367, 1

</llo_original>
